<compile_context>
chip_gen: v7x
topology: tpu7x:2x2x1
jax: 0.10.0
libtpu: 0.0.40
codegen_flags: <defaults>
</compile_context>

<pallas_src>
import functools

import jax
import jax.numpy as jnp
from jax.experimental import pallas as pl
from jax.experimental.pallas import tpu as pltpu


def _round_up(x, m):
    return ((x + m - 1) // m) * m


def _asap_eigen_kernel(code_ref, p_ref, pgt_ref, bproj_ref,
                       energy_ref, gcode_ref, *, asap_weight, grad_scale):
    """One grid step == one block of TB batch samples.

    code_ref  : (TB, L)   latent codes
    p_ref     : (L, K3)   decoder weight folded through sqrt(eigC)-scaled eigV
    pgt_ref   : (K3, L)   the same projection, transposed (backward path)
    bproj_ref : (1, K3)   decoder bias folded the same way
    energy_ref: (TB, 1)   per-sample ASAP energy (not yet divided by B)
    gcode_ref : (TB, L)   d(mean energy)/d(code)
    """
    # forward: y[b, (c,k)] = sqrt(eigC_k) * (eigV[:,k] . recon_c[b,:])
    y = jnp.dot(code_ref[...], p_ref[...],
                preferred_element_type=jnp.float32) + bproj_ref[...]
    # E_b = asapWeight * sum_j y_j^2   (eigC already folded via sqrt)
    energy_ref[...] = asap_weight * jnp.sum(y * y, axis=1, keepdims=True)
    # analytic backward of mean(E): d/dcode_b = (2*asapWeight/B) * y_b @ P^T
    gcode_ref[...] = grad_scale * jnp.dot(y, pgt_ref[...],
                                          preferred_element_type=jnp.float32)


def build_asap_projection(wdec, bdec, eigv_n, eigc):
    """Hoisted O(3*L*N*nComp) spectral projection of the linear decoder.

    Call once per decoder-weight update and reuse across energy evaluations.
    Returns (P (L, 3*nComp), PgT (3*nComp, L), bproj (1, 3*nComp)).
    """
    # Laplacian eigenvalues are >= 0 mathematically; clamp tiny negative
    # zero-modes coming out of numerical eigensolvers before sqrt.
    sqc = jnp.sqrt(jnp.maximum(eigc.astype(jnp.float32), 0.0))        # (nComp,)
    P = jnp.einsum('cln,nk->lck', wdec.astype(jnp.float32),
                   eigv_n.astype(jnp.float32)) * sqc                  # (L, 3, nComp)
    bproj = jnp.einsum('cn,nk->ck', bdec.astype(jnp.float32),
                       eigv_n.astype(jnp.float32)) * sqc              # (3, nComp)
    L = P.shape[0]
    K3 = 3 * P.shape[2]
    P = P.reshape(L, K3)
    # Backward projection == P.T exactly (eigVT is eigV^T for the symmetric
    # Laplacian); deriving it from P keeps forward/backward consistent even if
    # a caller's eigVT were re-orthogonalized separately.
    return P, P.T, bproj.reshape(1, K3)


def _pick_tb(batch, latent, k3, vmem_budget=40 * 1024 * 1024):
    """Largest MXU-friendly batch tile whose working set fits the VMEM budget."""
    invariant = (2 * latent * k3 + k3) * 4        # P + P^T + bproj, single-buffered
    tb = 1024
    while tb > 8:
        per_step = 4 * (2 * 2 * tb * latent       # code + gcode, double-buffered
                        + 2 * tb                  # energy column, double-buffered
                        + tb * k3)                # y live range
        if invariant + per_step <= vmem_budget:
            break
        tb //= 2
    tb = max(tb, 8)
    tb = min(tb, _round_up(batch, 8))
    # v7x has 2 TensorCores: give the "parallel" batch axis >= 2 blocks whenever
    # the batch is big enough to split (no effect on single-TC v5e/v6e).
    if batch >= 16 and pl.cdiv(batch, tb) < 2:
        tb = max(8, _round_up(pl.cdiv(batch, 2), 8))
    return tb


def asap_eigen_energy(code, P, PgT, bproj, asap_weight):
    """Returns (scalar mean ASAP energy, d(mean energy)/d(code))."""
    code = code.astype(jnp.float32)
    B, L = code.shape
    K3 = P.shape[1]

    TB = _pick_tb(B, L, K3)
    nb = pl.cdiv(B, TB)            # ragged last block; no batch padding copy

    kernel = functools.partial(_asap_eigen_kernel,
                               asap_weight=float(asap_weight),
                               grad_scale=2.0 * float(asap_weight) / B)

    e_per, gcode = pl.pallas_call(
        kernel,
        out_shape=(jax.ShapeDtypeStruct((B, 1), jnp.float32),
                   jax.ShapeDtypeStruct((B, L), jnp.float32)),
        grid_spec=pltpu.PrefetchScalarGridSpec(
            num_scalar_prefetch=0,
            grid=(nb,),
            in_specs=[
                # code block: last dim is the full array dim -> no L padding copy
                pl.BlockSpec((TB, L), lambda b: (b, 0)),
                # grid-invariant weights: constant index_map + single buffer
                pl.BlockSpec((L, K3), lambda b: (0, 0),
                             pipeline_mode=pl.Buffered(1)),
                pl.BlockSpec((K3, L), lambda b: (0, 0),
                             pipeline_mode=pl.Buffered(1)),
                pl.BlockSpec((1, K3), lambda b: (0, 0),
                             pipeline_mode=pl.Buffered(1)),
            ],
            out_specs=[
                pl.BlockSpec((TB, 1), lambda b: (b, 0)),     # per-sample energy
                pl.BlockSpec((TB, L), lambda b: (b, 0)),     # per-sample grad
            ],
        ),
        compiler_params=pltpu.CompilerParams(
            dimension_semantics=("parallel",),
            vmem_limit_bytes=48 * 1024 * 1024),              # safe on v5e/v6e/v7x
    )(code, P, PgT, bproj)

    energy = jnp.mean(e_per)       # the .mean() in forward(); e_per is exactly (B,1)
    return energy, gcode           # exact (B, L) — returned without an unpad copy


if __name__ == "__main__":
    # Small deterministic setup
    B, L, N, nComp, K = 2, 32, 16, 8, 4
    asap_weight = 0.5

    key = jax.random.PRNGKey(0)
    k_code, k_w, k_b, k_eig, k_c, k_nb, k_wm = jax.random.split(key, 7)

    code = jax.random.normal(k_code, (B, L), jnp.float32)

    # Linear decoder parameters: W[c, l, n], b[c, n]   (recon[b, n, c] layout)
    wdec = 0.1 * jax.random.normal(k_w, (3, L, N), jnp.float32)
    bdec = 0.1 * jax.random.normal(k_b, (3, N), jnp.float32)

    # Eigendecomposition of the (symmetric) mesh Laplacian: eigVT = eigV^T
    eigV = jax.random.normal(k_eig, (N, N), jnp.float32)
    eigVT = eigV.T
    eigC = jax.random.uniform(k_c, (N,), jnp.float32)

    eigv_n = eigV[:, :nComp]          # (N, nComp)
    eigvt_n = eigVT[:nComp, :]        # (nComp, N) == eigv_n.T (module interface)
    eigc_n = eigC[:nComp]             # (nComp,)

    # Placeholders mirroring the module's __init__ (folded into the eigendecomp)
    xyz1 = jnp.zeros((N, 3), jnp.float32)
    neighborsMatrix = jax.random.randint(k_nb, (N, K), 0, N)
    numNeighbors = jnp.full((N,), K, jnp.int32)
    weightMatrix = jax.random.uniform(k_wm, (N, K), jnp.float32)

    # Projection is hoisted out of the per-call path (cache per weight update).
    P, PgT, bproj = build_asap_projection(wdec, bdec, eigv_n, eigc_n)

    energy, grad_code = asap_eigen_energy(code, P, PgT, bproj, asap_weight)
    energy, grad_code = jax.block_until_ready((energy, grad_code))

    # Pure-JAX reference (decoder -> spectral energy -> mean -> grad)
    def reference_energy(c):
        recon = jnp.einsum('bl,cln->bnc', c, wdec) + bdec.T[None]        # (B, N, 3)
        y = jnp.einsum('kn,bnc->bkc', eigvt_n, recon)                    # (B, nComp, 3)
        e_per = asap_weight * jnp.sum(eigc_n[None, :, None] * y * y, axis=(1, 2))
        return jnp.mean(e_per)

    e_ref = reference_energy(code)
    g_ref = jax.grad(reference_energy)(code)

    assert jnp.allclose(energy, e_ref, rtol=2e-3, atol=1e-3), (energy, e_ref)
    assert jnp.allclose(grad_code, g_ref, rtol=2e-3, atol=1e-3)

    print("KERNEL_OK")
</pallas_src>

<mosaic_0001>
module attributes {stable_mosaic.version = 11 : i64} {
  func.func @_asap_eigen_kernel(%arg0: i32, %arg1: memref<8x32xf32, #tpu.memory_space<vmem>>, %arg2: memref<32x24xf32, #tpu.memory_space<vmem>>, %arg3: memref<24x32xf32, #tpu.memory_space<vmem>>, %arg4: memref<1x24xf32, #tpu.memory_space<vmem>>, %arg5: memref<8x1xf32, #tpu.memory_space<vmem>>, %arg6: memref<8x32xf32, #tpu.memory_space<vmem>>) attributes {dimension_semantics = [#tpu.dimension_semantics<parallel>], iteration_bounds = array<i64: 1>, scalar_prefetch = 0 : i64, scratch_operands = 0 : i64, tpu.core_type = #tpu.core_type<tc>, window_params = [{transform_indices = @transform_0, window_bounds = array<i64: 8, 32>}, {pipeline_mode = #tpu.pipeline_mode<synchronous>, transform_indices = @transform_1, window_bounds = array<i64: 32, 24>}, {pipeline_mode = #tpu.pipeline_mode<synchronous>, transform_indices = @transform_2, window_bounds = array<i64: 24, 32>}, {pipeline_mode = #tpu.pipeline_mode<synchronous>, transform_indices = @transform_3, window_bounds = array<i64: 1, 24>}, {transform_indices = @transform_4, window_bounds = array<i64: 8, 1>}, {transform_indices = @transform_5, window_bounds = array<i64: 8, 32>}]} {
    %c0 = arith.constant 0 : index
    %c0_0 = arith.constant 0 : index
    %0 = vector.load %arg1[%c0, %c0_0] : memref<8x32xf32, #tpu.memory_space<vmem>>, vector<8x32xf32>
    %c0_1 = arith.constant 0 : index
    %c0_2 = arith.constant 0 : index
    %1 = vector.load %arg2[%c0_1, %c0_2] : memref<32x24xf32, #tpu.memory_space<vmem>>, vector<32x24xf32>
    %cst = arith.constant dense<0.000000e+00> : vector<8x24xf32>
    %2 = tpu.matmul %0, %1, %cst {dimension_numbers = #tpu.dot_dimension_numbers<[1], [0], [0], [1], [0, 0, 1, 1], [], []>} : vector<8x32xf32>, vector<32x24xf32>, vector<8x24xf32> -> vector<8x24xf32>
    %c0_3 = arith.constant 0 : index
    %c0_4 = arith.constant 0 : index
    %3 = vector.load %arg4[%c0_3, %c0_4] : memref<1x24xf32, #tpu.memory_space<vmem>>, vector<1x24xf32>
    %4 = vector.broadcast %3 : vector<1x24xf32> to vector<8x24xf32>
    %5 = arith.addf %2, %4 : vector<8x24xf32>
    %6 = arith.mulf %5, %5 : vector<8x24xf32>
    %cst_5 = arith.constant dense<0.000000e+00> : vector<8xf32>
    %7 = vector.multi_reduction <add>, %6, %cst_5 [1] : vector<8x24xf32> to vector<8xf32>
    %8 = vector.shape_cast %7 : vector<8xf32> to vector<8x1xf32>
    %cst_6 = arith.constant 5.000000e-01 : f32
    %9 = vector.broadcast %cst_6 : f32 to vector<8x1xf32>
    %10 = arith.mulf %9, %8 : vector<8x1xf32>
    %c0_7 = arith.constant 0 : index
    %c0_8 = arith.constant 0 : index
    %11 = vector.load %arg5[%c0_7, %c0_8] : memref<8x1xf32, #tpu.memory_space<vmem>>, vector<8x1xf32>
    tpu.vector_store %arg5[%c0_7, %c0_8], %10 {strides = array<i32>} : memref<8x1xf32, #tpu.memory_space<vmem>>, vector<8x1xf32>,
    %c0_9 = arith.constant 0 : index
    %c0_10 = arith.constant 0 : index
    %12 = vector.load %arg3[%c0_9, %c0_10] : memref<24x32xf32, #tpu.memory_space<vmem>>, vector<24x32xf32>
    %cst_11 = arith.constant dense<0.000000e+00> : vector<8x32xf32>
    %13 = tpu.matmul %5, %12, %cst_11 {dimension_numbers = #tpu.dot_dimension_numbers<[1], [0], [0], [1], [0, 0, 1, 1], [], []>} : vector<8x24xf32>, vector<24x32xf32>, vector<8x32xf32> -> vector<8x32xf32>
    %cst_12 = arith.constant 5.000000e-01 : f32
    %14 = vector.broadcast %cst_12 : f32 to vector<8x32xf32>
    %15 = arith.mulf %14, %13 : vector<8x32xf32>
    %c0_13 = arith.constant 0 : index
    %c0_14 = arith.constant 0 : index
    %16 = vector.load %arg6[%c0_13, %c0_14] : memref<8x32xf32, #tpu.memory_space<vmem>>, vector<8x32xf32>
    tpu.vector_store %arg6[%c0_13, %c0_14], %15 {strides = array<i32>} : memref<8x32xf32, #tpu.memory_space<vmem>>, vector<8x32xf32>,
    return
  }
  func.func @transform_0(%arg0: i32) -> (i32, i32) {
    %c0_i32 = arith.constant 0 : i32
    %c0_i32_0 = arith.constant 0 : i32
    return %arg0, %c0_i32 : i32, i32
  }
  func.func @transform_1(%arg0: i32) -> (i32, i32) {
    %c0_i32 = arith.constant 0 : i32
    %c0_i32_0 = arith.constant 0 : i32
    %c0_i32_1 = arith.constant 0 : i32
    return %c0_i32, %c0_i32_0 : i32, i32
  }
  func.func @transform_2(%arg0: i32) -> (i32, i32) {
    %c0_i32 = arith.constant 0 : i32
    %c0_i32_0 = arith.constant 0 : i32
    %c0_i32_1 = arith.constant 0 : i32
    return %c0_i32, %c0_i32_0 : i32, i32
  }
  func.func @transform_3(%arg0: i32) -> (i32, i32) {
    %c0_i32 = arith.constant 0 : i32
    %c0_i32_0 = arith.constant 0 : i32
    %c0_i32_1 = arith.constant 0 : i32
    return %c0_i32, %c0_i32_0 : i32, i32
  }
  func.func @transform_4(%arg0: i32) -> (i32, i32) {
    %c0_i32 = arith.constant 0 : i32
    %c0_i32_0 = arith.constant 0 : i32
    return %arg0, %c0_i32 : i32, i32
  }
  func.func @transform_5(%arg0: i32) -> (i32, i32) {
    %c0_i32 = arith.constant 0 : i32
    %c0_i32_0 = arith.constant 0 : i32
    return %arg0, %c0_i32 : i32, i32
  }
}

</mosaic_0001>

<llo_original>
// kernel: tpu_custom_call.1
$region0: #{tpu_custom_call.1}
  #allocation0 [shape = 'u32[]', space=smem, size = 0x4, offset = 0x4, fixed_abs, tag = 'smem constant byte address 0x4 - core index']
  #allocation1 [shape = 'u32[144,128]{1,0:T(1,128)}', space=vmem, size = 0x12000, scoped, tag = 'internal scratch']
  %s0 = inlined_call_operand.vmem [shape: f32[2,32], index: 0, kind: input, shape index: {}]
  %s1 = inlined_call_operand.vmem [shape: f32[32,24], index: 1, kind: input, shape index: {}]
  %s2 = inlined_call_operand.vmem [shape: f32[24,32], index: 2, kind: input, shape index: {}]
  %s3 = inlined_call_operand.vmem [shape: f32[1,24], index: 3, kind: input, shape index: {}]
  %s4 = inlined_call_operand.vmem [shape: f32[2,1], index: 4, kind: output, shape index: {0}]
  %s5 = inlined_call_operand.hbm [shape: f32[2,32], index: 5, kind: output, shape index: {1}]
  %6 = xla_tuple %s4, %s5
  %s7 = sld [smem:[#allocation0]]
  $region64: #{tpu_custom_call.1} parent=0
    _
  %s9 = ssub.s32 1, %s7
  %s10 = scalar_select 0, %s9, %s7
  $region1: #{tpu_custom_call.1} parent=0
    #allocation2 [shape = 'u8[4096]{0}', space=vmem, size = 0x1000, scoped, tag = 'output window, operand 0, single buffered']
    #allocation3 [shape = 'u8[4096]{0}', space=vmem, size = 0x1000, scoped, tag = 'output window, operand 1, single buffered']
    #allocation4 [shape = 's32[1]{0}', space=sflag, size = 0x4, scoped, tag = 'scoped memory for tpu_custom_call.1']
    %11 = vsyncpa [#allocation4], 0
    // Predicated region
    $region2: #{tpu_custom_call.1} parent=1 // pred_check
      _
    $region3: #{tpu_custom_call.1} parent=1 // pred_check_branch
      %13 = sbr.rel (0) target = $region5
    $region4: #{tpu_custom_call.1} parent=1 // pred_region
      _
    $region5: #{tpu_custom_call.1} parent=1 // pred_fallthru
      _
    // Predicated region
    $region6: #{tpu_custom_call.1} parent=1 // pred_check
      _
    $region7: #{tpu_custom_call.1} parent=1 // pred_check_branch
      %15 = sbr.rel (0) target = $region9
    $region8: #{tpu_custom_call.1} parent=1 // pred_region
      _
    $region9: #{tpu_custom_call.1} parent=1 // pred_fallthru
      _
    // Predicated region
    $region10: #{tpu_custom_call.1} parent=1 // pred_check
      _
    $region11: #{tpu_custom_call.1} parent=1 // pred_check_branch
      %17 = sbr.rel (0) target = $region13
    $region12: #{tpu_custom_call.1} parent=1 // pred_region
      _
    $region13: #{tpu_custom_call.1} parent=1 // pred_fallthru
      _
    // Predicated region
    $region14: #{tpu_custom_call.1} parent=1 // pred_check
      _
    $region15: #{tpu_custom_call.1} parent=1 // pred_check_branch
      %19 = sbr.rel (0) target = $region17
    $region16: #{tpu_custom_call.1} parent=1 // pred_region
      _
    $region17: #{tpu_custom_call.1} parent=1 // pred_fallthru
      _
    %v20 = vld [vmem:[%s0] sm:$0xff]
    %v21 = vld [vmem:[%s1] sm:$0xff]
    %v22 = vld [vmem:[%s1 + $0x8] sm:$0xff]
    %v23 = vld [vmem:[%s1 + $0x10] sm:$0xff]
    %v24 = vld [vmem:[%s1 + $0x18] sm:$0xff]
    %v25 = vld [vmem:[%s3] sm:$0x1]
    %v27 = vlaneseq
    %v28 = vshrl.u32 %v27, 7
    %v29 = vsub.s32 0, %v28
    %v30 = vrot.slane %v25, %v29
    %vm32 = vcmask 261120
    %v34 = vsel %vm32, %v20, 0
    %36 = vmatprep.subr.mxu0 0.0
    %37 = vmatpush1.msra.mxu0 %v21
    %38 = vmatprep.subr.mxu0 0.0
    %39 = vmatpush1.msra.mxu0 %v22
    %40 = vmatprep.subr.mxu0 0.0
    %41 = vmatpush1.msra.mxu0 %v23
    %42 = vmatprep.subr.mxu0 0.0
    %43 = vmatpush1.msra.mxu0 %v24
    %44 = vmatprep.subr.mxu0 0.0
    %45 = vmatpush1.msra.mxu0 0.0
    %46 = vmatprep.subr.mxu0 0.0
    %47 = vmatpush1.msra.mxu0 0.0
    %48 = vmatprep.subr.mxu0 0.0
    %49 = vmatpush1.msra.mxu0 0.0
    %50 = vmatprep.subr.mxu0 0.0
    %51 = vmatpush1.msra.mxu0 0.0
    %52 = vmatprep.subr.mxu0 0.0
    %53 = vmatpush1.msra.mxu0 0.0
    %54 = vmatprep.subr.mxu0 0.0
    %55 = vmatpush1.msra.mxu0 0.0
    %56 = vmatprep.subr.mxu0 0.0
    %57 = vmatpush1.msra.mxu0 0.0
    %58 = vmatprep.subr.mxu0 0.0
    %59 = vmatpush1.msra.mxu0 0.0
    %60 = vmatprep.subr.mxu0 0.0
    %61 = vmatpush1.msra.mxu0 0.0
    %62 = vmatprep.subr.mxu0 0.0
    %63 = vmatpush1.msra.mxu0 0.0
    %64 = vmatprep.subr.mxu0 0.0
    %65 = vmatpush1.msra.mxu0 0.0
    %66 = vmatprep.subr.mxu0 0.0
    %67 = vmatpush1.msra.mxu0 0.0
    %68 = vmatprep.subr.mxu0 0.0
    %69 = vmatpush1.msra.mxu0 0.0
    %70 = vmatprep.subr.mxu0 0.0
    %71 = vmatpush1.msra.mxu0 0.0
    %72 = vmatprep.subr.mxu0 0.0
    %73 = vmatpush1.msra.mxu0 0.0
    %74 = vmatprep.subr.mxu0 0.0
    %75 = vmatpush1.msra.mxu0 0.0
    %76 = vmatprep.subr.mxu0 0.0
    %77 = vmatpush1.msra.mxu0 0.0
    %78 = vmatprep.subr.mxu0 0.0
    %79 = vmatpush1.msra.mxu0 0.0
    %80 = vmatprep.subr.mxu0 0.0
    %81 = vmatpush1.msra.mxu0 0.0
    %82 = vmatprep.subr.mxu0 0.0
    %83 = vmatpush1.msra.mxu0 0.0
    %84 = vmatprep.subr.mxu0 0.0
    %85 = vmatpush1.msra.mxu0 0.0
    %86 = vmatprep.subr.mxu0 0.0
    %87 = vmatpush1.msra.mxu0 0.0
    %88 = vmatprep.subr.mxu0 0.0
    %89 = vmatpush1.msra.mxu0 0.0
    %90 = vmatprep.subr.mxu0 0.0
    %91 = vmatpush1.msra.mxu0 0.0
    %92 = vmatprep.subr.mxu0 0.0
    %93 = vmatpush1.msra.mxu0 0.0
    %94 = vmatprep.subr.mxu0 0.0
    %95 = vmatpush1.msra.mxu0 0.0
    %96 = vmatprep.subr.mxu0 0.0
    %97 = vmatpush1.msra.mxu0 0.0
    %98 = vmatprep.subr.mxu0 0.0
    %99 = vmatpush1.msra.mxu0 0.0
    %100 = vmatprep.mubr.f32.mxu0 0.0
    %101 = vmatmul.mubr.f32.gmra.mrb[0].mxu0 %v34
    %v102 = vpop.f32.mrb[0].mxu0
    %v103 = vadd.f32 %v30, %v102
    %v104 = vpop.f32.mrb[0].mxu0
    %105 = vdwg.mxu0
    %v106 = vmul.f32 %v103, %v103
    %vm107 = vcmask 195584
    %v108 = vsel %vm107, %v106, 0.0
    %109 = vadd.xlane.f32.xlu0 %v108
    %v110 = vpop.xlane.xlu0 %109
    %v111 = vmul.f32 %v110, 0.5
    %vm112 = vcmask 7168
    %113 = vst.msk [vmem:[#allocation2] sm:$0xff] %vm112, %v111
    %v114 = vld [vmem:[%s2] sm:$0xff]
    %v115 = vld [vmem:[%s2 + $0x8] sm:$0xff]
    %v116 = vld [vmem:[%s2 + $0x10] sm:$0xff]
    %v118 = vsel %vm107, %v103, 0
    %120 = vmatprep.subr.mxu0 0.0
    %121 = vmatpush1.msra.mxu0 %v114
    %122 = vmatprep.subr.mxu0 0.0
    %123 = vmatpush1.msra.mxu0 %v115
    %124 = vmatprep.subr.mxu0 0.0
    %125 = vmatpush1.msra.mxu0 %v116
    %126 = vmatprep.subr.mxu0 0.0
    %127 = vmatpush1.msra.mxu0 0.0
    %128 = vmatprep.subr.mxu0 0.0
    %129 = vmatpush1.msra.mxu0 0.0
    %130 = vmatprep.subr.mxu0 0.0
    %131 = vmatpush1.msra.mxu0 0.0
    %132 = vmatprep.subr.mxu0 0.0
    %133 = vmatpush1.msra.mxu0 0.0
    %134 = vmatprep.subr.mxu0 0.0
    %135 = vmatpush1.msra.mxu0 0.0
    %136 = vmatprep.subr.mxu0 0.0
    %137 = vmatpush1.msra.mxu0 0.0
    %138 = vmatprep.subr.mxu0 0.0
    %139 = vmatpush1.msra.mxu0 0.0
    %140 = vmatprep.subr.mxu0 0.0
    %141 = vmatpush1.msra.mxu0 0.0
    %142 = vmatprep.subr.mxu0 0.0
    %143 = vmatpush1.msra.mxu0 0.0
    %144 = vmatprep.subr.mxu0 0.0
    %145 = vmatpush1.msra.mxu0 0.0
    %146 = vmatprep.subr.mxu0 0.0
    %147 = vmatpush1.msra.mxu0 0.0
    %148 = vmatprep.subr.mxu0 0.0
    %149 = vmatpush1.msra.mxu0 0.0
    %150 = vmatprep.subr.mxu0 0.0
    %151 = vmatpush1.msra.mxu0 0.0
    %152 = vmatprep.subr.mxu0 0.0
    %153 = vmatpush1.msra.mxu0 0.0
    %154 = vmatprep.subr.mxu0 0.0
    %155 = vmatpush1.msra.mxu0 0.0
    %156 = vmatprep.subr.mxu0 0.0
    %157 = vmatpush1.msra.mxu0 0.0
    %158 = vmatprep.subr.mxu0 0.0
    %159 = vmatpush1.msra.mxu0 0.0
    %160 = vmatprep.subr.mxu0 0.0
    %161 = vmatpush1.msra.mxu0 0.0
    %162 = vmatprep.subr.mxu0 0.0
    %163 = vmatpush1.msra.mxu0 0.0
    %164 = vmatprep.subr.mxu0 0.0
    %165 = vmatpush1.msra.mxu0 0.0
    %166 = vmatprep.subr.mxu0 0.0
    %167 = vmatpush1.msra.mxu0 0.0
    %168 = vmatprep.subr.mxu0 0.0
    %169 = vmatpush1.msra.mxu0 0.0
    %170 = vmatprep.subr.mxu0 0.0
    %171 = vmatpush1.msra.mxu0 0.0
    %172 = vmatprep.subr.mxu0 0.0
    %173 = vmatpush1.msra.mxu0 0.0
    %174 = vmatprep.subr.mxu0 0.0
    %175 = vmatpush1.msra.mxu0 0.0
    %176 = vmatprep.subr.mxu0 0.0
    %177 = vmatpush1.msra.mxu0 0.0
    %178 = vmatprep.subr.mxu0 0.0
    %179 = vmatpush1.msra.mxu0 0.0
    %180 = vmatprep.subr.mxu0 0.0
    %181 = vmatpush1.msra.mxu0 0.0
    %182 = vmatprep.subr.mxu0 0.0
    %183 = vmatpush1.msra.mxu0 0.0
    %184 = vmatprep.mubr.f32.mxu0 0.0
    %185 = vmatmul.mubr.f32.gmra.mrb[0].mxu0 %v118
    %v186 = vpop.f32.mrb[0].mxu0
    %v187 = vadd.f32 0.0, %v186
    %v188 = vpop.f32.mrb[0].mxu0
    %189 = vdwg.mxu0
    %v190 = vmul.f32 %v187, 0.5
    %191 = vst.msk [vmem:[#allocation3] sm:$0xff] %vm32, %v190
    // Predicated region
    $region18: #{tpu_custom_call.1} parent=1 // pred_check
      _
    $region19: #{tpu_custom_call.1} parent=1 // pred_check_branch
      %193 = sbr.rel (0) target = $region21
    $region20: #{tpu_custom_call.1} parent=1 // pred_region
      // Predicated region
      $region22: #{tpu_custom_call.1} parent=20 // pred_check
        _
      $region23: #{tpu_custom_call.1} parent=20 // pred_check_branch
        %195 = sbr.rel (0) target = $region25
      $region24: #{tpu_custom_call.1} parent=20 // pred_region
        // Predicated region
        $region26: #{tpu_custom_call.1} parent=24 // pred_check
          _
        $region27: #{tpu_custom_call.1} parent=24 // pred_check_branch
          %197 = sbr.rel target = $region29
        $region28: #{tpu_custom_call.1} parent=24 // pred_region
          // Predicated region
          $region41: #{tpu_custom_call.1} parent=28 // pred_check
            _
          $region42: #{tpu_custom_call.1} parent=28 // pred_check_branch
            %212 = sbr.rel (0) target = $region44
          $region43: #{tpu_custom_call.1} parent=28 // pred_region
            loop: start=0, step=1, limit=1
            $region45: #{tpu_custom_call.1} parent=43 // loop_pre_header
              _
            $region46: #{tpu_custom_call.1} parent=43 // loop_header
              %s215 = sphi 0, %s219
              %p216 = scmp.ge.s32.totalorder %s215, 1
              %s220 = sphi [#allocation2], [#allocation2]
              %s221 = sphi %s4, %s4
            $region47: #{tpu_custom_call.1} parent=43 // loop_header_branch
              %218 = sbr.rel (%p216) target = $region51
            $region48: #{tpu_custom_call.1} parent=43 // loop_body
              %v222 = vld [vmem:[%s220] sm:$0x3]
              %223 = vst [vmem:[%s221] sm:$0x3] %v222
            $region49: #{tpu_custom_call.1} parent=43 // loop_footer
              %s219 = sadd.s32 1, %s215
            $region50: #{tpu_custom_call.1} parent=43 // loop_footer_branch
              %214 = sbr.rel target = $region46
            $region51: #{tpu_custom_call.1} parent=43 // loop_exit
              _
          $region44: #{tpu_custom_call.1} parent=28 // pred_fallthru
            _
        $region29: #{tpu_custom_call.1} parent=24 // pred_fallthru
          _
        // Predicated region
        $region30: #{tpu_custom_call.1} parent=24 // pred_check
          _
        $region31: #{tpu_custom_call.1} parent=24 // pred_check_branch
          %199 = sbr.rel (0) target = $region33
        $region32: #{tpu_custom_call.1} parent=24 // pred_region
          loop: start=0, step=1, limit=1
          $region34: #{tpu_custom_call.1} parent=32 // loop_pre_header
            _
          $region35: #{tpu_custom_call.1} parent=32 // loop_header
            %s202 = sphi 0, %s206
            %p203 = scmp.ge.s32.totalorder %s202, 1
            %s207 = sphi [#allocation2], [#allocation2]
            %s208 = sphi %s4, %s4
          $region36: #{tpu_custom_call.1} parent=32 // loop_header_branch
            %205 = sbr.rel (%p203) target = $region40
          $region37: #{tpu_custom_call.1} parent=32 // loop_body
            %v209 = vld [vmem:[%s207] sm:$0x3]
            %210 = vst [vmem:[%s208] sm:$0x3] %v209
          $region38: #{tpu_custom_call.1} parent=32 // loop_footer
            %s206 = sadd.s32 1, %s202
          $region39: #{tpu_custom_call.1} parent=32 // loop_footer_branch
            %201 = sbr.rel target = $region35
          $region40: #{tpu_custom_call.1} parent=32 // loop_exit
            _
        $region33: #{tpu_custom_call.1} parent=24 // pred_fallthru
          _
      $region25: #{tpu_custom_call.1} parent=20 // pred_fallthru
        _
      %224 = vnop
    $region21: #{tpu_custom_call.1} parent=1 // pred_fallthru
      _
    // Predicated region
    $region52: #{tpu_custom_call.1} parent=1 // pred_check
      _
    $region53: #{tpu_custom_call.1} parent=1 // pred_check_branch
      %226 = sbr.rel (0) target = $region55
    $region54: #{tpu_custom_call.1} parent=1 // pred_region
      %s228 = ssub.s32 128, 32
      %229 = vsyncadd [#allocation4], %s228
      %s230 = sshll.u32 [#allocation3], 4
      %s231 = int_to_ptr.vmem [resolvable:$true] %s230
      %236 = dma.vmem_to_hbm [thread:$0]  %s231, 32, %s5, [#allocation4], 32, 32, 2
    $region55: #{tpu_custom_call.1} parent=1 // pred_fallthru
      _
    // Predicated region
    $region56: #{tpu_custom_call.1} parent=1 // pred_check
      _
    $region57: #{tpu_custom_call.1} parent=1 // pred_check_branch
      %238 = sbr.rel (0) target = $region59
    $region58: #{tpu_custom_call.1} parent=1 // pred_region
      _
    $region59: #{tpu_custom_call.1} parent=1 // pred_fallthru
      _
    // Predicated region
    $region60: #{tpu_custom_call.1} parent=1 // pred_check
      _
    $region61: #{tpu_custom_call.1} parent=1 // pred_check_branch
      %240 = sbr.rel (0) target = $region63
    $region62: #{tpu_custom_call.1} parent=1 // pred_region
      %241 = dma.done [#allocation4], 128
    $region63: #{tpu_custom_call.1} parent=1 // pred_fallthru
      _
    %242 = vsyncpa [#allocation4], 1

</llo_original>
